<compile_context>
chip_gen: v7x
topology: tpu7x:2x2x1
jax: 0.10.0
libtpu: 0.0.40
codegen_flags: <defaults>
</compile_context>

<pallas_src>
import functools

import jax
import jax.numpy as jnp
from jax.experimental import pallas as pl
from jax.experimental.pallas import tpu as pltpu

_LANE = 128


# --------------------------------------------------------------------------- #
# Hardware-aware VMEM budgeting
# --------------------------------------------------------------------------- #
def _vmem_capacity_bytes():
    try:
        return int(pltpu.get_tpu_info().vmem_capacity_bytes)
    except Exception:
        # Conservative: assume v7x-sized (64 MiB per-TC) VMEM if we can't query.
        return 64 * 1024 * 1024


def _budget_and_limit():
    cap = _vmem_capacity_bytes()
    # Scoped compiler limit: ~0.75x capacity, always leaving >=16 MiB headroom
    # under physical for compiler-internal scratch / semaphores.
    limit = min(int(0.75 * cap), cap - 16 * 1024 * 1024)
    limit = max(limit, 32 * 1024 * 1024)
    # Budget for the x in/out double-buffered blocks; leave room for weights.
    budget = min(int(0.45 * cap), limit - 8 * 1024 * 1024)
    budget = max(budget, 8 * 1024 * 1024)
    return budget, limit


def _pick_batch_block(n, c, l, x_itemsize, budget_bytes, target_steps=8):
    """Largest divisor of n whose block fits the budget, capped for >=target_steps."""
    # x block + out block, double-buffered.
    per_batch = 4 * c * l * x_itemsize
    if x_itemsize < 4:
        # Headroom for a possible f32 intermediate of the reduction (bf16 input).
        per_batch += c * l * 4
    nb = max(1, min(n, budget_bytes // max(per_batch, 1)))
    # Keep >= min(n, target_steps) grid steps so BlockSpec pipelining can overlap
    # prefetch/writeback with compute and (v7x) both TensorCores get work.
    nb = min(nb, max(1, n // min(n, target_steps)))
    while n % nb:
        nb -= 1
    return nb, per_batch


def _const_spec(shape, index_map):
    """BlockSpec for a constant-index operand: single-buffered if supported."""
    if hasattr(pl, "Buffered"):
        try:
            return pl.BlockSpec(shape, index_map, pipeline_mode=pl.Buffered(1))
        except TypeError:
            pass
    return pl.BlockSpec(shape, index_map)


def _apply_scale_act(s, kind):
    if kind == "hardsigmoid":
        return jnp.clip(s / 6.0 + 0.5, 0.0, 1.0)
    return jax.nn.sigmoid(s)


# --------------------------------------------------------------------------- #
# Single-pass kernel: one (nb, C, L) block per grid step
# --------------------------------------------------------------------------- #
def _se_kernel(x_ref, w1t_ref, b1_ref, w2t_ref, b2_ref, o_ref, *, inv_l, scale_act):
    x = x_ref[...]                                          # (nb, C, Lp)
    # Squeeze: mean over L, accumulated in f32 without materializing a full
    # f32 copy of the block (matters for bf16 inputs / VMEM budget).
    m = jnp.sum(x, axis=-1, dtype=jnp.float32) * inv_l      # (nb, C)

    # fc1 (k=1 Conv1d) + ReLU (delta).
    h = jnp.dot(m.astype(w1t_ref.dtype), w1t_ref[...],
                preferred_element_type=jnp.float32) + b1_ref[...]
    h = jnp.maximum(h, 0.0)

    # fc2 (k=1 Conv1d) + sigma activation.
    s = jnp.dot(h.astype(w2t_ref.dtype), w2t_ref[...],
                preferred_element_type=jnp.float32) + b2_ref[...]
    s = _apply_scale_act(s, scale_act).astype(x.dtype)      # (nb, C)

    # Excite: broadcast the per-channel scale over L (lanes).
    o_ref[...] = x * s[:, :, None]


def _se_single_pass(x, w1t, b1r, w2t, b2r, nb, inv_l, scale_act, vmem_limit):
    N, C, Lp = x.shape
    Csq = w1t.shape[1]
    kernel = functools.partial(_se_kernel, inv_l=inv_l, scale_act=scale_act)
    return pl.pallas_call(
        kernel,
        out_shape=jax.ShapeDtypeStruct((N, C, Lp), x.dtype),
        grid_spec=pltpu.PrefetchScalarGridSpec(
            num_scalar_prefetch=0,
            grid=(N // nb,),
            in_specs=[
                pl.BlockSpec((nb, C, Lp), lambda i: (i, 0, 0)),       # x
                _const_spec((C, Csq), lambda i: (0, 0)),              # fc1 W^T
                _const_spec((1, Csq), lambda i: (0, 0)),              # fc1 b
                _const_spec((Csq, C), lambda i: (0, 0)),              # fc2 W^T
                _const_spec((1, C), lambda i: (0, 0)),                # fc2 b
            ],
            out_specs=pl.BlockSpec((nb, C, Lp), lambda i: (i, 0, 0)),
        ),
        compiler_params=pltpu.CompilerParams(
            dimension_semantics=("parallel",),
            vmem_limit_bytes=int(vmem_limit),
        ),
    )(x, w1t, b1r, w2t, b2r)


# --------------------------------------------------------------------------- #
# Two-pass L-tiled fallback (single (1, C, L) block does not fit VMEM budget)
# --------------------------------------------------------------------------- #
def _se_scale_kernel(x_ref, w1t_ref, b1_ref, w2t_ref, b2_ref, s_ref, acc_ref,
                     *, inv_l, scale_act):
    l = pl.program_id(1)

    @pl.when(l == 0)
    def _():
        acc_ref[...] = jnp.zeros_like(acc_ref)

    # Accumulate per-channel sums over L tiles (f32).
    acc_ref[...] += jnp.sum(x_ref[...], axis=-1, dtype=jnp.float32)   # (1, C)

    @pl.when(l == pl.num_programs(1) - 1)
    def _():
        m = acc_ref[...] * inv_l
        h = jnp.dot(m.astype(w1t_ref.dtype), w1t_ref[...],
                    preferred_element_type=jnp.float32) + b1_ref[...]
        h = jnp.maximum(h, 0.0)
        s = jnp.dot(h.astype(w2t_ref.dtype), w2t_ref[...],
                    preferred_element_type=jnp.float32) + b2_ref[...]
        s = _apply_scale_act(s, scale_act)
        s_ref[...] = s[:, :, None].astype(s_ref.dtype)                # (1, C, 1)


def _se_apply_kernel(x_ref, s_ref, o_ref):
    x = x_ref[...]                                                    # (1, C, tl)
    o_ref[...] = x * s_ref[...].astype(x.dtype)                       # scale (1, C, 1)


def _se_two_pass(x, w1t, b1r, w2t, b2r, inv_l, scale_act, budget, vmem_limit,
                 tl=None):
    N, C, Lp = x.shape
    Csq = w1t.shape[1]
    itemsize = jnp.dtype(x.dtype).itemsize

    if tl is None:
        # Largest multiple-of-128 L tile that divides Lp and fits the budget
        # (x in + out, double-buffered, plus f32 headroom for bf16 input).
        per_l = 4 * C * itemsize + (C * 4 if itemsize < 4 else 0)
        tl = max(_LANE, (budget // max(per_l, 1)) // _LANE * _LANE)
        tl = min(tl, Lp)
        while tl > 0 and Lp % tl:
            tl -= _LANE
        if tl <= 0:
            # TODO(synk): ragged last L tile (Lp not a multiple of 128 and too
            # large for one block) — in practice unreachable because large L is
            # already lane-padded in the wrapper.
            tl = Lp

    # Pass 1: reduce over L tiles, then squeeze math -> per-(n, c) scale.
    scale = pl.pallas_call(
        functools.partial(_se_scale_kernel, inv_l=inv_l, scale_act=scale_act),
        out_shape=jax.ShapeDtypeStruct((N, C, 1), jnp.float32),
        grid_spec=pltpu.PrefetchScalarGridSpec(
            num_scalar_prefetch=0,
            grid=(N, Lp // tl),
            in_specs=[
                pl.BlockSpec((1, C, tl), lambda i, l: (i, 0, l)),
                _const_spec((C, Csq), lambda i, l: (0, 0)),
                _const_spec((1, Csq), lambda i, l: (0, 0)),
                _const_spec((Csq, C), lambda i, l: (0, 0)),
                _const_spec((1, C), lambda i, l: (0, 0)),
            ],
            out_specs=pl.BlockSpec((1, C, 1), lambda i, l: (i, 0, 0)),
            scratch_shapes=[pltpu.VMEM((1, C), jnp.float32)],
        ),
        compiler_params=pltpu.CompilerParams(
            dimension_semantics=("parallel", "arbitrary"),
            vmem_limit_bytes=int(vmem_limit),
        ),
    )(x, w1t, b1r, w2t, b2r)

    # Pass 2: re-stream x tiles and apply the per-channel scale.
    return pl.pallas_call(
        _se_apply_kernel,
        out_shape=jax.ShapeDtypeStruct((N, C, Lp), x.dtype),
        grid_spec=pltpu.PrefetchScalarGridSpec(
            num_scalar_prefetch=0,
            grid=(N, Lp // tl),
            in_specs=[
                pl.BlockSpec((1, C, tl), lambda i, l: (i, 0, l)),
                pl.BlockSpec((1, C, 1), lambda i, l: (i, 0, 0)),
            ],
            out_specs=pl.BlockSpec((1, C, tl), lambda i, l: (i, 0, l)),
        ),
        compiler_params=pltpu.CompilerParams(
            dimension_semantics=("parallel", "parallel"),
            vmem_limit_bytes=int(vmem_limit),
        ),
    )(x, scale)


# --------------------------------------------------------------------------- #
# Public wrapper
# --------------------------------------------------------------------------- #
def se_layer(x, w1, b1, w2, b2, *, scale_activation="sigmoid",
             force_two_pass=False, two_pass_tl=None):
    """Squeeze-and-Excitation forward.

    x: (N, C, L); w1: (Csq, C); b1: (Csq,); w2: (C, Csq); b2: (C,)
    Weight layout matches PyTorch Conv1d(in, out, 1).weight[:, :, 0].
    scale_activation: "sigmoid" (module default) or "hardsigmoid" (mobilenetv3).
    """
    N, C, L = x.shape
    Csq = w1.shape[0]
    budget, vmem_limit = _budget_and_limit()

    # One-time layout plumbing OUTSIDE the kernel: pre-transposed weights and
    # row-shaped biases (no per-grid-step transposes).  Keep weights bf16 when
    # the activations are bf16 (dots still accumulate in f32 on the MXU).
    wdtype = x.dtype if x.dtype == jnp.bfloat16 else jnp.float32
    w1t = jnp.asarray(w1).astype(wdtype).T                   # (C, Csq)
    w2t = jnp.asarray(w2).astype(wdtype).T                   # (Csq, C)
    b1r = jnp.asarray(b1).astype(jnp.float32).reshape(1, Csq)
    b2r = jnp.asarray(b2).astype(jnp.float32).reshape(1, C)

    # Lane-dense last dim (unmasked vst): pad L to a multiple of 128 only when
    # the extra wrapper pad/slice traffic is small (<=12.5%); for small L the
    # extra full passes over x would cost more than masked stores.
    pad = (-L) % _LANE
    if pad and pad * 8 <= L:
        xk = jnp.pad(x, ((0, 0), (0, 0), (0, pad)))
        Lp = L + pad
    else:
        xk = x
        Lp = L

    itemsize = jnp.dtype(x.dtype).itemsize
    nb, per_batch = _pick_batch_block(N, C, Lp, itemsize, budget)
    inv_l = 1.0 / L   # true length: zero-padding does not perturb the sum

    if force_two_pass or per_batch > budget:
        out = _se_two_pass(xk, w1t, b1r, w2t, b2r, inv_l, scale_activation,
                           budget, vmem_limit, tl=two_pass_tl)
    else:
        out = _se_single_pass(xk, w1t, b1r, w2t, b2r, nb, inv_l,
                              scale_activation, vmem_limit)

    if Lp != L:
        out = out[:, :, :L]
    return out


def se_layer_ref(x, w1, b1, w2, b2, *, scale_activation="sigmoid"):
    """Pure-JAX reference mirroring the PyTorch forward.

    Note: for bf16 inputs this accumulates the mean in bf16 (like jnp.mean),
    while the kernel accumulates in f32 (more accurate) — use looser tolerances
    for bf16 comparisons.
    """
    mean = jnp.mean(x, axis=2, keepdims=True)                     # (N, C, 1)
    h = jnp.einsum("sc,ncl->nsl", w1, mean) + b1[None, :, None]
    h = jnp.maximum(h, 0.0)
    s = jnp.einsum("cs,nsl->ncl", w2, h) + b2[None, :, None]
    s = _apply_scale_act(s, scale_activation)
    return s * x


if __name__ == "__main__":
    key = jax.random.PRNGKey(0)
    N, C, Csq, L = 2, 8, 4, 16

    kx, k1, k2, k3, k4, kx2 = jax.random.split(key, 6)
    x = jax.random.normal(kx, (N, C, L), dtype=jnp.float32)
    # PyTorch Conv1d weights are (out_ch, in_ch, 1); kernel-size-1 -> a matrix.
    w1 = jax.random.normal(k1, (Csq, C), dtype=jnp.float32) * 0.1
    b1 = jax.random.normal(k2, (Csq,), dtype=jnp.float32) * 0.1
    w2 = jax.random.normal(k3, (C, Csq), dtype=jnp.float32) * 0.1
    b2 = jax.random.normal(k4, (C,), dtype=jnp.float32) * 0.1

    # Primary path: single-pass, batch-blocked grid (>=2 steps).
    out = se_layer(x, w1, b1, w2, b2)
    jax.block_until_ready(out)
    ref = se_layer_ref(x, w1, b1, w2, b2)
    assert jnp.allclose(out, ref, atol=1e-5, rtol=1e-5), "single-pass mismatch"

    # Exercise the L-tiled two-pass fallback (multi-step reduction grid) and
    # the hardsigmoid scale activation at a slightly longer, lane-aligned L.
    L2 = 256
    x2 = jax.random.normal(kx2, (N, C, L2), dtype=jnp.float32)
    out2 = se_layer(x2, w1, b1, w2, b2, scale_activation="hardsigmoid",
                    force_two_pass=True, two_pass_tl=128)
    jax.block_until_ready(out2)
    ref2 = se_layer_ref(x2, w1, b1, w2, b2, scale_activation="hardsigmoid")
    assert jnp.allclose(out2, ref2, atol=1e-5, rtol=1e-5), "two-pass mismatch"

    print("KERNEL_OK")
</pallas_src>

<mosaic_0001>
module attributes {stable_mosaic.version = 11 : i64} {
  func.func @_se_kernel(%arg0: i32, %arg1: memref<1x8x16xf32, #tpu.memory_space<vmem>>, %arg2: memref<8x4xf32, #tpu.memory_space<vmem>>, %arg3: memref<1x4xf32, #tpu.memory_space<vmem>>, %arg4: memref<4x8xf32, #tpu.memory_space<vmem>>, %arg5: memref<1x8xf32, #tpu.memory_space<vmem>>, %arg6: memref<1x8x16xf32, #tpu.memory_space<vmem>>) attributes {dimension_semantics = [#tpu.dimension_semantics<parallel>], iteration_bounds = array<i64: 2>, scalar_prefetch = 0 : i64, scratch_operands = 0 : i64, tpu.core_type = #tpu.core_type<tc>, window_params = [{transform_indices = @transform_0, window_bounds = array<i64: 1, 8, 16>}, {pipeline_mode = #tpu.pipeline_mode<synchronous>, transform_indices = @transform_1, window_bounds = array<i64: 8, 4>}, {pipeline_mode = #tpu.pipeline_mode<synchronous>, transform_indices = @transform_2, window_bounds = array<i64: 1, 4>}, {pipeline_mode = #tpu.pipeline_mode<synchronous>, transform_indices = @transform_3, window_bounds = array<i64: 4, 8>}, {pipeline_mode = #tpu.pipeline_mode<synchronous>, transform_indices = @transform_4, window_bounds = array<i64: 1, 8>}, {transform_indices = @transform_5, window_bounds = array<i64: 1, 8, 16>}]} {
    %c0 = arith.constant 0 : index
    %c0_0 = arith.constant 0 : index
    %c0_1 = arith.constant 0 : index
    %0 = vector.load %arg1[%c0, %c0_0, %c0_1] : memref<1x8x16xf32, #tpu.memory_space<vmem>>, vector<1x8x16xf32>
    %cst = arith.constant dense<0.000000e+00> : vector<1x8xf32>
    %1 = vector.multi_reduction <add>, %0, %cst [2] : vector<1x8x16xf32> to vector<1x8xf32>
    %cst_2 = arith.constant 6.250000e-02 : f32
    %2 = vector.broadcast %cst_2 : f32 to vector<1x8xf32>
    %3 = arith.mulf %1, %2 : vector<1x8xf32>
    %c0_3 = arith.constant 0 : index
    %c0_4 = arith.constant 0 : index
    %4 = vector.load %arg2[%c0_3, %c0_4] : memref<8x4xf32, #tpu.memory_space<vmem>>, vector<8x4xf32>
    %cst_5 = arith.constant dense<0.000000e+00> : vector<1x4xf32>
    %5 = tpu.matmul %3, %4, %cst_5 {dimension_numbers = #tpu.dot_dimension_numbers<[1], [0], [0], [1], [0, 0, 1, 1], [], []>} : vector<1x8xf32>, vector<8x4xf32>, vector<1x4xf32> -> vector<1x4xf32>
    %c0_6 = arith.constant 0 : index
    %c0_7 = arith.constant 0 : index
    %6 = vector.load %arg3[%c0_6, %c0_7] : memref<1x4xf32, #tpu.memory_space<vmem>>, vector<1x4xf32>
    %7 = arith.addf %5, %6 : vector<1x4xf32>
    %cst_8 = arith.constant 0.000000e+00 : f32
    %8 = vector.broadcast %cst_8 : f32 to vector<1x4xf32>
    %9 = arith.maximumf %7, %8 : vector<1x4xf32>
    %c0_9 = arith.constant 0 : index
    %c0_10 = arith.constant 0 : index
    %10 = vector.load %arg4[%c0_9, %c0_10] : memref<4x8xf32, #tpu.memory_space<vmem>>, vector<4x8xf32>
    %cst_11 = arith.constant dense<0.000000e+00> : vector<1x8xf32>
    %11 = tpu.matmul %9, %10, %cst_11 {dimension_numbers = #tpu.dot_dimension_numbers<[1], [0], [0], [1], [0, 0, 1, 1], [], []>} : vector<1x4xf32>, vector<4x8xf32>, vector<1x8xf32> -> vector<1x8xf32>
    %c0_12 = arith.constant 0 : index
    %c0_13 = arith.constant 0 : index
    %12 = vector.load %arg5[%c0_12, %c0_13] : memref<1x8xf32, #tpu.memory_space<vmem>>, vector<1x8xf32>
    %13 = arith.addf %11, %12 : vector<1x8xf32>
    %14 = arith.negf %13 : vector<1x8xf32>
    %15 = math.exp %14 : vector<1x8xf32>
    %cst_14 = arith.constant 1.000000e+00 : f32
    %16 = vector.broadcast %cst_14 : f32 to vector<1x8xf32>
    %17 = arith.addf %16, %15 : vector<1x8xf32>
    %18 = arith.divf %16, %17 : vector<1x8xf32>
    %19 = vector.shape_cast %18 : vector<1x8xf32> to vector<1x8x1xf32>
    %20 = vector.broadcast %19 : vector<1x8x1xf32> to vector<1x8x16xf32>
    %21 = arith.mulf %0, %20 : vector<1x8x16xf32>
    %c0_15 = arith.constant 0 : index
    %c0_16 = arith.constant 0 : index
    %c0_17 = arith.constant 0 : index
    %22 = vector.load %arg6[%c0_15, %c0_16, %c0_17] : memref<1x8x16xf32, #tpu.memory_space<vmem>>, vector<1x8x16xf32>
    tpu.vector_store %arg6[%c0_15, %c0_16, %c0_17], %21 {strides = array<i32>} : memref<1x8x16xf32, #tpu.memory_space<vmem>>, vector<1x8x16xf32>,
    return
  }
  func.func @transform_0(%arg0: i32) -> (i32, i32, i32) {
    %c0_i32 = arith.constant 0 : i32
    %c0_i32_0 = arith.constant 0 : i32
    %c0_i32_1 = arith.constant 0 : i32
    return %arg0, %c0_i32, %c0_i32_0 : i32, i32, i32
  }
  func.func @transform_1(%arg0: i32) -> (i32, i32) {
    %c0_i32 = arith.constant 0 : i32
    %c0_i32_0 = arith.constant 0 : i32
    %c0_i32_1 = arith.constant 0 : i32
    return %c0_i32, %c0_i32_0 : i32, i32
  }
  func.func @transform_2(%arg0: i32) -> (i32, i32) {
    %c0_i32 = arith.constant 0 : i32
    %c0_i32_0 = arith.constant 0 : i32
    %c0_i32_1 = arith.constant 0 : i32
    return %c0_i32, %c0_i32_0 : i32, i32
  }
  func.func @transform_3(%arg0: i32) -> (i32, i32) {
    %c0_i32 = arith.constant 0 : i32
    %c0_i32_0 = arith.constant 0 : i32
    %c0_i32_1 = arith.constant 0 : i32
    return %c0_i32, %c0_i32_0 : i32, i32
  }
  func.func @transform_4(%arg0: i32) -> (i32, i32) {
    %c0_i32 = arith.constant 0 : i32
    %c0_i32_0 = arith.constant 0 : i32
    %c0_i32_1 = arith.constant 0 : i32
    return %c0_i32, %c0_i32_0 : i32, i32
  }
  func.func @transform_5(%arg0: i32) -> (i32, i32, i32) {
    %c0_i32 = arith.constant 0 : i32
    %c0_i32_0 = arith.constant 0 : i32
    %c0_i32_1 = arith.constant 0 : i32
    return %arg0, %c0_i32, %c0_i32_0 : i32, i32, i32
  }
}

</mosaic_0001>

<llo_original>
// kernel: tpu_custom_call.1
$region0: #{tpu_custom_call.1}
  #allocation0 [shape = 'u32[]', space=smem, size = 0x4, offset = 0x4, fixed_abs, tag = 'smem constant byte address 0x4 - core index']
  #allocation1 [shape = 'u32[144,128]{1,0:T(1,128)}', space=vmem, size = 0x12000, scoped, tag = 'internal scratch']
  %s0 = inlined_call_operand.hbm [shape: f32[2,8,16], index: 0, kind: input, shape index: {}]
  %s1 = inlined_call_operand.vmem [shape: f32[8,4], index: 1, kind: input, shape index: {}]
  %s2 = inlined_call_operand.vmem [shape: f32[1,4], index: 2, kind: input, shape index: {}]
  %s3 = inlined_call_operand.vmem [shape: f32[4,8], index: 3, kind: input, shape index: {}]
  %s4 = inlined_call_operand.vmem [shape: f32[1,8], index: 4, kind: input, shape index: {}]
  %s5 = inlined_call_operand.hbm [shape: f32[2,8,16], index: 5, kind: output, shape index: {}]
  %s6 = sld [smem:[#allocation0]]
  $region57: #{tpu_custom_call.1} parent=0
    _
  %s8 = ssub.s32 1, %s6
  %s9 = scalar_select 0, %s8, %s6
  $region1: #{tpu_custom_call.1} parent=0
    #allocation2 [shape = 'u8[8192]{0}', space=vmem, size = 0x2000, scoped, tag = 'input window, operand 0']
    #allocation3 [shape = 's32[2]{0}', space=sflag, size = 0x8, scoped, tag = 'scoped memory for tpu_custom_call.1']
    #allocation4 [shape = 's32[2]{0}', space=sflag, size = 0x8, scoped, tag = 'scoped memory for tpu_custom_call.1']
    #allocation5 [shape = 'u8[8192]{0}', space=vmem, size = 0x2000, scoped, tag = 'output window, operand 0']
    %10 = vsyncpa [#allocation3], 0
    %s11 = scalar_lea.sflag [#allocation3], 1
    %12 = vsyncpa %s11, 0
    %13 = vsyncpa [#allocation4], 0
    %s14 = scalar_lea.sflag [#allocation4], 1
    %15 = vsyncpa %s14, 0
    loop: start=0, step=1, limit=4
    $region2: #{tpu_custom_call.1} parent=1 // loop_pre_header
      _
    $region3: #{tpu_custom_call.1} parent=1 // loop_header
      %s17 = sphi 0, %s21
      %p18 = scmp.ge.s32.totalorder %s17, 4
      %s27 = sphi 0, %s29
      %s30 = sphi 0, %s27
      %s31 = sphi 0, %s30
      %s47 = sphi 0, %s31
      %s51 = sphi 0, %s51
      %s53 = sphi 0, %s51
      %s54 = sphi 0, %s53
      %s68 = sphi 0, %s54
      %s72 = sphi 0, %s72
      %s74 = sphi 0, %s72
      %s75 = sphi 0, %s74
      %s89 = sphi 0, %s75
      %s93 = sphi 0, %s93
      %s95 = sphi 0, %s93
      %s96 = sphi 0, %s95
      %s110 = sphi 0, %s96
      %s114 = sphi 0, %s114
      %s116 = sphi 0, %s114
      %s117 = sphi 0, %s116
      %s131 = sphi 0, %s117
      %s137 = sphi 0, %s139
      %s140 = sphi 0, %s137
      %s141 = sphi 0, %s140
      %s157 = sphi 0, %s141
    $region4: #{tpu_custom_call.1} parent=1 // loop_header_branch
      %20 = sbr.rel (%p18) target = $region8
    $region5: #{tpu_custom_call.1} parent=1 // loop_body
      %s22 = ssub.s32 %s17, 1
      %s23 = ssub.s32 %s17, 2
      %s24 = sadd.s32 %s17, 1
      %s25 = ssub.s32 %s17, %s24
      %p26 = scmp.eq.s32.totalorder %s25, 0
      %s28 = sadd.s32 %s27, 1
      %s29 = scalar_select %p26, %s27, %s28
      %p32 = pneg %p26
      %p33 = scmp.eq.s32.totalorder %s17, 1
      %p34 = por %p32, %p33
      %p35 = scmp.ne.s32.totalorder %s27, %s30
      %p36 = scmp.eq.s32.totalorder %s17, 0
      %p37 = por %p35, %p36
      %p38 = scmp.ne.s32.totalorder %s27, %s30
      %p39 = scmp.eq.s32.totalorder %s22, 1
      %p40 = por %p38, %p39
      %p41 = scmp.ne.s32.totalorder %s30, %s31
      %p42 = scmp.eq.s32.totalorder %s22, 0
      %p43 = por %p41, %p42
      %p44 = scmp.ne.s32.totalorder %s30, %s31
      %p45 = scmp.eq.s32.totalorder %s23, 1
      %p46 = por %p44, %p45
      %p48 = scmp.ne.s32.totalorder %s31, %s47
      %p49 = scmp.eq.s32.totalorder %s23, 0
      %p50 = por %p48, %p49
      %s52 = sadd.s32 %s51, 1
      %p55 = scmp.eq.s32.totalorder %s17, 1
      %p56 = scmp.ne.s32.totalorder %s51, %s53
      %p57 = scmp.eq.s32.totalorder %s17, 0
      %p58 = por %p56, %p57
      %p59 = scmp.ne.s32.totalorder %s51, %s53
      %p60 = scmp.eq.s32.totalorder %s22, 1
      %p61 = por %p59, %p60
      %p62 = scmp.ne.s32.totalorder %s53, %s54
      %p63 = scmp.eq.s32.totalorder %s22, 0
      %p64 = por %p62, %p63
      %p65 = scmp.ne.s32.totalorder %s53, %s54
      %p66 = scmp.eq.s32.totalorder %s23, 1
      %p67 = por %p65, %p66
      %p69 = scmp.ne.s32.totalorder %s54, %s68
      %p70 = scmp.eq.s32.totalorder %s23, 0
      %p71 = por %p69, %p70
      %s73 = sadd.s32 %s72, 1
      %p76 = scmp.eq.s32.totalorder %s17, 1
      %p77 = scmp.ne.s32.totalorder %s72, %s74
      %p78 = scmp.eq.s32.totalorder %s17, 0
      %p79 = por %p77, %p78
      %p80 = scmp.ne.s32.totalorder %s72, %s74
      %p81 = scmp.eq.s32.totalorder %s22, 1
      %p82 = por %p80, %p81
      %p83 = scmp.ne.s32.totalorder %s74, %s75
      %p84 = scmp.eq.s32.totalorder %s22, 0
      %p85 = por %p83, %p84
      %p86 = scmp.ne.s32.totalorder %s74, %s75
      %p87 = scmp.eq.s32.totalorder %s23, 1
      %p88 = por %p86, %p87
      %p90 = scmp.ne.s32.totalorder %s75, %s89
      %p91 = scmp.eq.s32.totalorder %s23, 0
      %p92 = por %p90, %p91
      %s94 = sadd.s32 %s93, 1
      %p97 = scmp.eq.s32.totalorder %s17, 1
      %p98 = scmp.ne.s32.totalorder %s93, %s95
      %p99 = scmp.eq.s32.totalorder %s17, 0
      %p100 = por %p98, %p99
      %p101 = scmp.ne.s32.totalorder %s93, %s95
      %p102 = scmp.eq.s32.totalorder %s22, 1
      %p103 = por %p101, %p102
      %p104 = scmp.ne.s32.totalorder %s95, %s96
      %p105 = scmp.eq.s32.totalorder %s22, 0
      %p106 = por %p104, %p105
      %p107 = scmp.ne.s32.totalorder %s95, %s96
      %p108 = scmp.eq.s32.totalorder %s23, 1
      %p109 = por %p107, %p108
      %p111 = scmp.ne.s32.totalorder %s96, %s110
      %p112 = scmp.eq.s32.totalorder %s23, 0
      %p113 = por %p111, %p112
      %s115 = sadd.s32 %s114, 1
      %p118 = scmp.eq.s32.totalorder %s17, 1
      %p119 = scmp.ne.s32.totalorder %s114, %s116
      %p120 = scmp.eq.s32.totalorder %s17, 0
      %p121 = por %p119, %p120
      %p122 = scmp.ne.s32.totalorder %s114, %s116
      %p123 = scmp.eq.s32.totalorder %s22, 1
      %p124 = por %p122, %p123
      %p125 = scmp.ne.s32.totalorder %s116, %s117
      %p126 = scmp.eq.s32.totalorder %s22, 0
      %p127 = por %p125, %p126
      %p128 = scmp.ne.s32.totalorder %s116, %s117
      %p129 = scmp.eq.s32.totalorder %s23, 1
      %p130 = por %p128, %p129
      %p132 = scmp.ne.s32.totalorder %s117, %s131
      %p133 = scmp.eq.s32.totalorder %s23, 0
      %p134 = por %p132, %p133
      %s135 = ssub.s32 %s17, %s24
      %p136 = scmp.eq.s32.totalorder %s135, 0
      %s138 = sadd.s32 %s137, 1
      %s139 = scalar_select %p136, %s137, %s138
      %p142 = pneg %p136
      %p143 = scmp.eq.s32.totalorder %s17, 1
      %p144 = por %p142, %p143
      %p145 = scmp.ne.s32.totalorder %s137, %s140
      %p146 = scmp.eq.s32.totalorder %s17, 0
      %p147 = por %p145, %p146
      %p148 = scmp.ne.s32.totalorder %s137, %s140
      %p149 = scmp.eq.s32.totalorder %s22, 1
      %p150 = por %p148, %p149
      %p151 = scmp.ne.s32.totalorder %s140, %s141
      %p152 = scmp.eq.s32.totalorder %s22, 0
      %p153 = por %p151, %p152
      %p154 = scmp.ne.s32.totalorder %s140, %s141
      %p155 = scmp.eq.s32.totalorder %s23, 1
      %p156 = por %p154, %p155
      %p158 = scmp.ne.s32.totalorder %s141, %s157
      %p159 = scmp.eq.s32.totalorder %s23, 0
      %p160 = por %p158, %p159
      %p161 = scmp.le.s32.totalorder 1, %s17
      %p162 = scmp.lt.s32.totalorder %s17, 3
      %p163 = pnand %p161, %p162
      %p164 = pneg %p163
      // Predicated region
      $region9: #{tpu_custom_call.1} parent=5 // pred_check
        _
      $region10: #{tpu_custom_call.1} parent=5 // pred_check_branch
        %166 = sbr.rel (%p163) target = $region12
      $region11: #{tpu_custom_call.1} parent=5 // pred_region
        %s167 = ssub.s32 %s17, 1
        // Predicated region
        $region13: #{tpu_custom_call.1} parent=11 // pred_check
          %p168 = pneg %p64
        $region14: #{tpu_custom_call.1} parent=11 // pred_check_branch
          %170 = sbr.rel (%p168) target = $region16
        $region15: #{tpu_custom_call.1} parent=11 // pred_region
          _
        $region16: #{tpu_custom_call.1} parent=11 // pred_fallthru
          _
        // Predicated region
        $region17: #{tpu_custom_call.1} parent=11 // pred_check
          %p171 = pneg %p85
        $region18: #{tpu_custom_call.1} parent=11 // pred_check_branch
          %173 = sbr.rel (%p171) target = $region20
        $region19: #{tpu_custom_call.1} parent=11 // pred_region
          _
        $region20: #{tpu_custom_call.1} parent=11 // pred_fallthru
          _
        // Predicated region
        $region21: #{tpu_custom_call.1} parent=11 // pred_check
          %p174 = pneg %p106
        $region22: #{tpu_custom_call.1} parent=11 // pred_check_branch
          %176 = sbr.rel (%p174) target = $region24
        $region23: #{tpu_custom_call.1} parent=11 // pred_region
          _
        $region24: #{tpu_custom_call.1} parent=11 // pred_fallthru
          _
        // Predicated region
        $region25: #{tpu_custom_call.1} parent=11 // pred_check
          %p177 = pneg %p127
        $region26: #{tpu_custom_call.1} parent=11 // pred_check_branch
          %179 = sbr.rel (%p177) target = $region28
        $region27: #{tpu_custom_call.1} parent=11 // pred_region
          _
        $region28: #{tpu_custom_call.1} parent=11 // pred_fallthru
          _
      $region12: #{tpu_custom_call.1} parent=5 // pred_fallthru
        _
      %p180 = scmp.lt.s32.totalorder %s17, 2
      // Predicated region
      $region29: #{tpu_custom_call.1} parent=5 // pred_check
        %p181 = pneg %p180
      $region30: #{tpu_custom_call.1} parent=5 // pred_check_branch
        %183 = sbr.rel (%p181) target = $region32
      $region31: #{tpu_custom_call.1} parent=5 // pred_region
        // Predicated region
        $region33: #{tpu_custom_call.1} parent=31 // pred_check
          %p184 = pneg %p37
        $region34: #{tpu_custom_call.1} parent=31 // pred_check_branch
          %186 = sbr.rel (%p184) target = $region36
        $region35: #{tpu_custom_call.1} parent=31 // pred_region
          %s187 = sand.u32 %s27, 1
          %s188 = scalar_lea.sflag [#allocation3], %s187
          %s189 = sand.u32 %s27, 1
          %s190 = smul.addr %s189, 8
          %s191 = scalar_lea.vmem [#allocation2], %s190
          %s193 = ssub.s32 128, 128
          %194 = vsyncadd %s188, %s193
          %s195 = smul.addr %s17, 128
          %s196 = scalar_lea.hbm %s0, %s195
          %s198 = sshll.u32 %s191, 4
          %s199 = int_to_ptr.vmem [resolvable:$true] %s198
          %201 = dma.hbm_to_vmem [thread:$0]  %s196, 128, %s199, %s188
        $region36: #{tpu_custom_call.1} parent=31 // pred_fallthru
          _
      $region32: #{tpu_custom_call.1} parent=5 // pred_fallthru
        _
      %p202 = scmp.le.s32.totalorder 1, %s17
      %p203 = scmp.lt.s32.totalorder %s17, 3
      %p204 = pnand %p202, %p203
      %p205 = pneg %p204
      // Predicated region
      $region37: #{tpu_custom_call.1} parent=5 // pred_check
        _
      $region38: #{tpu_custom_call.1} parent=5 // pred_check_branch
        %207 = sbr.rel (%p204) target = $region40
      $region39: #{tpu_custom_call.1} parent=5 // pred_region
        %s208 = ssub.s32 %s17, 1
        %s209 = sand.u32 %s30, 1
        %s210 = scalar_lea.sflag [#allocation3], %s209
        %s211 = sand.u32 %s30, 1
        %s212 = smul.addr %s211, 8
        %s213 = scalar_lea.vmem [#allocation2], %s212
        // Predicated region
        $region41: #{tpu_custom_call.1} parent=39 // pred_check
          %p214 = pneg %p43
        $region42: #{tpu_custom_call.1} parent=39 // pred_check_branch
          %216 = sbr.rel (%p214) target = $region44
        $region43: #{tpu_custom_call.1} parent=39 // pred_region
          %217 = dma.done %s210, 128
        $region44: #{tpu_custom_call.1} parent=39 // pred_fallthru
          _
        %s218 = sand.u32 %s30, 1
        %s219 = scalar_lea.sflag [#allocation3], %s218
        %s220 = sand.u32 %s30, 1
        %s221 = smul.addr %s220, 8
        %s222 = scalar_lea.vmem [#allocation2], %s221
        %p223 = pneg %p43
        %p224 = pneg %p40
        %p225 = pneg %p64
        %p226 = pneg %p61
        %p227 = pneg %p85
        %p228 = pneg %p82
        %p229 = pneg %p106
        %p230 = pneg %p103
        %p231 = pneg %p127
        %p232 = pneg %p124
        %p233 = pneg %p153
        %p234 = pneg %p150
        %s235 = sand.u32 %s140, 1
        %s236 = scalar_lea.sflag [#allocation4], %s235
        %s237 = sand.u32 %s140, 1
        %s238 = smul.addr %s237, 8
        %s239 = scalar_lea.vmem [#allocation5], %s238
        %v240 = vld [vmem:[%s213] sm:$0xff]
        %vm241 = vcmask 130048
        %v242 = vsel %vm241, %v240, 0.0
        %243 = vadd.xlane.f32.xlu0 %v242
        %v244 = vpop.xlane.xlu0 %243
        %v245 = vmul.f32 %v244, 0.0625
        %v246 = vld [vmem:[%s1] sm:$0xff]
        %v247 = vld [vmem:[%s2] sm:$0x1]
        %v249 = vlaneseq
        %v250 = vand.u32 %v249, 127
        %v251 = vlaneseq
        %v252 = vshrl.u32 %v251, 7
        %v253 = vsub.s32 %v250, %v252
        %v254 = vrot.slane %v245, %v253
        %vm255 = vcmask 64512
        %v256 = vsel %vm255, %v254, 0
        %258 = vmatprep.subr.mxu0 0.0
        %259 = vmatpush1.msra.mxu0 %v246
        %260 = vmatprep.subr.mxu0 0.0
        %261 = vmatpush1.msra.mxu0 0.0
        %262 = vmatprep.subr.mxu0 0.0
        %263 = vmatpush1.msra.mxu0 0.0
        %264 = vmatprep.subr.mxu0 0.0
        %265 = vmatpush1.msra.mxu0 0.0
        %266 = vmatprep.subr.mxu0 0.0
        %267 = vmatpush1.msra.mxu0 0.0
        %268 = vmatprep.subr.mxu0 0.0
        %269 = vmatpush1.msra.mxu0 0.0
        %270 = vmatprep.subr.mxu0 0.0
        %271 = vmatpush1.msra.mxu0 0.0
        %272 = vmatprep.subr.mxu0 0.0
        %273 = vmatpush1.msra.mxu0 0.0
        %274 = vmatprep.subr.mxu0 0.0
        %275 = vmatpush1.msra.mxu0 0.0
        %276 = vmatprep.subr.mxu0 0.0
        %277 = vmatpush1.msra.mxu0 0.0
        %278 = vmatprep.subr.mxu0 0.0
        %279 = vmatpush1.msra.mxu0 0.0
        %280 = vmatprep.subr.mxu0 0.0
        %281 = vmatpush1.msra.mxu0 0.0
        %282 = vmatprep.subr.mxu0 0.0
        %283 = vmatpush1.msra.mxu0 0.0
        %284 = vmatprep.subr.mxu0 0.0
        %285 = vmatpush1.msra.mxu0 0.0
        %286 = vmatprep.subr.mxu0 0.0
        %287 = vmatpush1.msra.mxu0 0.0
        %288 = vmatprep.subr.mxu0 0.0
        %289 = vmatpush1.msra.mxu0 0.0
        %290 = vmatprep.subr.mxu0 0.0
        %291 = vmatpush1.msra.mxu0 0.0
        %292 = vmatprep.subr.mxu0 0.0
        %293 = vmatpush1.msra.mxu0 0.0
        %294 = vmatprep.subr.mxu0 0.0
        %295 = vmatpush1.msra.mxu0 0.0
        %296 = vmatprep.subr.mxu0 0.0
        %297 = vmatpush1.msra.mxu0 0.0
        %298 = vmatprep.subr.mxu0 0.0
        %299 = vmatpush1.msra.mxu0 0.0
        %300 = vmatprep.subr.mxu0 0.0
        %301 = vmatpush1.msra.mxu0 0.0
        %302 = vmatprep.subr.mxu0 0.0
        %303 = vmatpush1.msra.mxu0 0.0
        %304 = vmatprep.subr.mxu0 0.0
        %305 = vmatpush1.msra.mxu0 0.0
        %306 = vmatprep.subr.mxu0 0.0
        %307 = vmatpush1.msra.mxu0 0.0
        %308 = vmatprep.subr.mxu0 0.0
        %309 = vmatpush1.msra.mxu0 0.0
        %310 = vmatprep.subr.mxu0 0.0
        %311 = vmatpush1.msra.mxu0 0.0
        %312 = vmatprep.subr.mxu0 0.0
        %313 = vmatpush1.msra.mxu0 0.0
        %314 = vmatprep.subr.mxu0 0.0
        %315 = vmatpush1.msra.mxu0 0.0
        %316 = vmatprep.subr.mxu0 0.0
        %317 = vmatpush1.msra.mxu0 0.0
        %318 = vmatprep.subr.mxu0 0.0
        %319 = vmatpush1.msra.mxu0 0.0
        %320 = vmatprep.subr.mxu0 0.0
        %321 = vmatpush1.msra.mxu0 0.0
        %322 = vmatprep.mubr.f32.mxu0 0.0
        %323 = vmatmul.mubr.f32.gmra.mrb[0].mxu0 %v256
        %v324 = vpop.f32.mrb[0].mxu0
        %v325 = vadd.f32 %v247, %v324
        %v326 = vpop.f32.mrb[0].mxu0
        %327 = vdwg.mxu0
        %v328 = vmax.f32 %v325, 0.0
        %v329 = vld [vmem:[%s3] sm:$0xf]
        %v330 = vld [vmem:[%s4] sm:$0x1]
        %vm331 = vcmask 31744
        %v333 = vsel %vm331, %v328, 0
        %vm335 = vcmask 1043456
        %v337 = vsel %vm335, %v329, 0
        %339 = vmatprep.subr.mxu0 0.0
        %340 = vmatpush1.msra.mxu0 %v337
        %341 = vmatprep.subr.mxu0 0.0
        %342 = vmatpush1.msra.mxu0 0.0
        %343 = vmatprep.subr.mxu0 0.0
        %344 = vmatpush1.msra.mxu0 0.0
        %345 = vmatprep.subr.mxu0 0.0
        %346 = vmatpush1.msra.mxu0 0.0
        %347 = vmatprep.subr.mxu0 0.0
        %348 = vmatpush1.msra.mxu0 0.0
        %349 = vmatprep.subr.mxu0 0.0
        %350 = vmatpush1.msra.mxu0 0.0
        %351 = vmatprep.subr.mxu0 0.0
        %352 = vmatpush1.msra.mxu0 0.0
        %353 = vmatprep.subr.mxu0 0.0
        %354 = vmatpush1.msra.mxu0 0.0
        %355 = vmatprep.subr.mxu0 0.0
        %356 = vmatpush1.msra.mxu0 0.0
        %357 = vmatprep.subr.mxu0 0.0
        %358 = vmatpush1.msra.mxu0 0.0
        %359 = vmatprep.subr.mxu0 0.0
        %360 = vmatpush1.msra.mxu0 0.0
        %361 = vmatprep.subr.mxu0 0.0
        %362 = vmatpush1.msra.mxu0 0.0
        %363 = vmatprep.subr.mxu0 0.0
        %364 = vmatpush1.msra.mxu0 0.0
        %365 = vmatprep.subr.mxu0 0.0
        %366 = vmatpush1.msra.mxu0 0.0
        %367 = vmatprep.subr.mxu0 0.0
        %368 = vmatpush1.msra.mxu0 0.0
        %369 = vmatprep.subr.mxu0 0.0
        %370 = vmatpush1.msra.mxu0 0.0
        %371 = vmatprep.subr.mxu0 0.0
        %372 = vmatpush1.msra.mxu0 0.0
        %373 = vmatprep.subr.mxu0 0.0
        %374 = vmatpush1.msra.mxu0 0.0
        %375 = vmatprep.subr.mxu0 0.0
        %376 = vmatpush1.msra.mxu0 0.0
        %377 = vmatprep.subr.mxu0 0.0
        %378 = vmatpush1.msra.mxu0 0.0
        %379 = vmatprep.subr.mxu0 0.0
        %380 = vmatpush1.msra.mxu0 0.0
        %381 = vmatprep.subr.mxu0 0.0
        %382 = vmatpush1.msra.mxu0 0.0
        %383 = vmatprep.subr.mxu0 0.0
        %384 = vmatpush1.msra.mxu0 0.0
        %385 = vmatprep.subr.mxu0 0.0
        %386 = vmatpush1.msra.mxu0 0.0
        %387 = vmatprep.subr.mxu0 0.0
        %388 = vmatpush1.msra.mxu0 0.0
        %389 = vmatprep.subr.mxu0 0.0
        %390 = vmatpush1.msra.mxu0 0.0
        %391 = vmatprep.subr.mxu0 0.0
        %392 = vmatpush1.msra.mxu0 0.0
        %393 = vmatprep.subr.mxu0 0.0
        %394 = vmatpush1.msra.mxu0 0.0
        %395 = vmatprep.subr.mxu0 0.0
        %396 = vmatpush1.msra.mxu0 0.0
        %397 = vmatprep.subr.mxu0 0.0
        %398 = vmatpush1.msra.mxu0 0.0
        %399 = vmatprep.subr.mxu0 0.0
        %400 = vmatpush1.msra.mxu0 0.0
        %401 = vmatprep.subr.mxu0 0.0
        %402 = vmatpush1.msra.mxu0 0.0
        %403 = vmatprep.mubr.f32.mxu0 0.0
        %404 = vmatmul.mubr.f32.gmra.mrb[0].mxu0 %v333
        %v405 = vpop.f32.mrb[0].mxu0
        %v406 = vadd.f32 %v330, %v405
        %v407 = vpop.f32.mrb[0].mxu0
        %408 = vdwg.mxu0
        %v409 = vxor.u32 %v406, 2147483648
        %v410 = vmul.f32 %v409, 1.442695
        %v411 = vpow.pop %v410
        %v412 = vadd.f32 %v411, 1.0
        %v413 = vrcp.pop %v412
        %v414 = vmul.f32 1.0, %v413
        %v415 = vlaneseq
        %v416 = vshrl.u32 %v415, 7
        %v417 = vsub.s32 0, %v416
        %v418 = vrot.slane %v414, %v417
        %420 = vbcast.lane.b32.xlu0 %v418, 256
        %v421 = vpop.permute.xlu0 %420
        %v422 = vmul.f32 %v240, %v421
        %423 = vst.msk [vmem:[%s239] sm:$0xff] %vm241, %v422
        %s424 = sand.u32 %s140, 1
        %s425 = scalar_lea.sflag [#allocation4], %s424
        %s426 = sand.u32 %s140, 1
        %s427 = smul.addr %s426, 8
        %s428 = scalar_lea.vmem [#allocation5], %s427
        // Predicated region
        $region45: #{tpu_custom_call.1} parent=39 // pred_check
          %p429 = pneg %p150
        $region46: #{tpu_custom_call.1} parent=39 // pred_check_branch
          %431 = sbr.rel (%p429) target = $region48
        $region47: #{tpu_custom_call.1} parent=39 // pred_region
          %s433 = ssub.s32 128, 128
          %434 = vsyncadd %s425, %s433
          %s435 = smul.addr %s22, 128
          %s436 = scalar_lea.hbm %s5, %s435
          %s438 = sshll.u32 %s428, 4
          %s439 = int_to_ptr.vmem [resolvable:$true] %s438
          %441 = dma.vmem_to_hbm [thread:$0]  %s439, 128, %s436, %s425
        $region48: #{tpu_custom_call.1} parent=39 // pred_fallthru
          _
      $region40: #{tpu_custom_call.1} parent=5 // pred_fallthru
        _
      %p442 = scmp.le.s32.totalorder 2, %s17
      // Predicated region
      $region49: #{tpu_custom_call.1} parent=5 // pred_check
        %p443 = pneg %p442
      $region50: #{tpu_custom_call.1} parent=5 // pred_check_branch
        %445 = sbr.rel (%p443) target = $region52
      $region51: #{tpu_custom_call.1} parent=5 // pred_region
        %s446 = ssub.s32 %s17, 2
        // Predicated region
        $region53: #{tpu_custom_call.1} parent=51 // pred_check
          %p447 = pneg %p156
        $region54: #{tpu_custom_call.1} parent=51 // pred_check_branch
          %449 = sbr.rel (%p447) target = $region56
        $region55: #{tpu_custom_call.1} parent=51 // pred_region
          %s450 = sand.u32 %s141, 1
          %s451 = scalar_lea.sflag [#allocation4], %s450
          %s452 = sand.u32 %s141, 1
          %s453 = smul.addr %s452, 8
          %s454 = scalar_lea.vmem [#allocation5], %s453
          %455 = dma.done %s451, 128
        $region56: #{tpu_custom_call.1} parent=51 // pred_fallthru
          _
      $region52: #{tpu_custom_call.1} parent=5 // pred_fallthru
        _
    $region6: #{tpu_custom_call.1} parent=1 // loop_footer
      %s21 = sadd.s32 1, %s17
    $region7: #{tpu_custom_call.1} parent=1 // loop_footer_branch
      %16 = sbr.rel target = $region3
    $region8: #{tpu_custom_call.1} parent=1 // loop_exit
      _
    %456 = vsyncpa [#allocation3], 1
    %s457 = scalar_lea.sflag [#allocation3], 1
    %458 = vsyncpa %s457, 1
    %459 = vsyncpa [#allocation4], 1
    %s460 = scalar_lea.sflag [#allocation4], 1
    %461 = vsyncpa %s460, 1

</llo_original>
